<compile_context>
chip_gen: v7x
topology: tpu7x:2x2x1
jax: 0.10.0
libtpu: 0.0.40
codegen_flags: <defaults>
</compile_context>

<pallas_src>
import jax
import jax.numpy as jnp
import numpy as np
from jax.experimental import pallas as pl
from jax.experimental.pallas import tpu as pltpu

# ---------------------------------------------------------------------------
# Module config (small stand-ins for the real sizes):
#   PointCloudGeneratorWithAttention(input_feature_dim=E, point_cloud_size=P,
#                                    num_heads=H, dim_feedforward=F)
# flatten(start_dim=1) + Linear(E, F) forces seq_len == 1.
# ---------------------------------------------------------------------------
B       = 2            # demo batch
S       = 1            # sequence length (forced to 1 by the module)
E       = 64           # input_feature_dim == embed_dim
H       = 16           # num_heads (reference path only)
DH      = E // H       # head_dim
F       = 128          # dim_feedforward (small stand-in for 2048)
P       = 16           # point_cloud_size
OUT     = 3 * P        # final linear output dim (48)

OUT_PAD    = 128       # lane-dense output (unmasked vst instead of vst.msk on 48)
BIAS_W     = max(F, OUT_PAD)
MAX_TILE_B = 256       # v6e/v7x MXUs are 256-wide; cap batch tile here

# Weight / matmul-input dtype.  bf16 halves the weight-DMA bytes that dominate
# at the real F=2048 and uses the 2x bf16 MXU rate; accumulation stays f32 via
# preferred_element_type, biases stay f32 and are added post-accumulation.
COMPUTE_DTYPE = jnp.bfloat16
# TODO(synk): v7x: fp8 weights (MXU has no int path) with per-output-channel
# scales folded into the bias slab; v5e/v6e: int8 per-channel.  Relax the
# correctness tolerance accordingly when enabling.


def _pcg_kernel(x_ref, wf_ref, w2_ref, w3_ref, b_ref, o_ref):
    """One batch tile of the fused forward pass.

    seq_len == 1  =>  softmax over a single key == 1  =>  attention output is
    exactly the V projection.  V-proj, out-proj and Linear1 are pre-folded
    offline into wf (E, F), so the dead q/k/score/softmax path never appears.
    """
    dot = lambda a, b: jnp.dot(a, b, preferred_element_type=jnp.float32)
    leaky = lambda t: jnp.maximum(t, 0.2 * t)          # == LeakyReLU(0.2), 1 VALU op
    cdt = wf_ref.dtype                                 # matmul input dtype (bf16)

    x = x_ref[...].astype(cdt)                                       # (TB, E)
    h1 = leaky(dot(x, wf_ref[...]) + b_ref[0:1, :F])                 # (TB, F) f32
    h2 = leaky(dot(h1.astype(cdt), w2_ref[...]) + b_ref[1:2, :F])    # (TB, F) f32
    o_ref[...] = dot(h2.astype(cdt), w3_ref[...]) + b_ref[2:3, :OUT_PAD]


def _round_up(n, m):
    return pl.cdiv(n, m) * m


def point_cloud_forward(x, packed):
    """x: (B, 1, E) float32 -> (B, P, 3) float32."""
    wf, w2, w3p, bias = packed
    b_in, s_in, e_in = x.shape
    assert s_in == 1, "module's flatten(start_dim=1)+Linear forces seq_len == 1"
    assert e_in == E

    # No E->128 K padding (perf feedback): a (tile_b, 64) block is legal since
    # 64 equals the full array dim; saves x DMA bytes + first-matmul FLOPs.
    x2d = x.reshape(b_in, E).astype(jnp.float32)

    # Adaptive batch tile: tiny batches -> round_up(B, 8) (avoid a mostly-
    # padding slab); large batches -> 256 for the 256-wide MXUs (v6e/v7x).
    tile_b = min(MAX_TILE_B, _round_up(max(b_in, 1), 8))
    b_pad = _round_up(b_in, tile_b)
    if b_pad != b_in:
        x2d = jnp.pad(x2d, ((0, b_pad - b_in), (0, 0)))
    num_tiles = b_pad // tile_b

    flops = 2 * b_pad * (E * F + F * F + F * OUT_PAD)
    weight_bytes = sum(int(a.size) * a.dtype.itemsize for a in (wf, w2, w3p, bias))
    bytes_accessed = int(x2d.size * 4 + weight_bytes + b_pad * OUT_PAD * 4)

    # Explicit VMEM budget (perf feedback): weights (x2 covers the default
    # double-buffer fallback) + pipelined x/out tiles + f32 intermediates,
    # 2x headroom, clamped under v7x's 64 MiB physical VMEM.
    vmem_need = 2 * weight_bytes + 2 * tile_b * (E + OUT_PAD) * 4 + 2 * tile_b * F * 4
    vmem_limit = int(min(60 * 2**20, max(16 * 2**20, 2 * vmem_need)))

    # Megacore sharding only pays off with enough batch tiles; on a weight-DMA
    # bound kernel a 1-2 tile grid would just duplicate weight DMA per core.
    semantics = ("parallel",) if num_tiles >= 4 else ("arbitrary",)

    # NOTE(perf feedback): dtype reduction (bf16 here, fp8/int8 later) is
    # preferred over K-tiling the (F, F) matmul -- K-tiling adds grid steps
    # without reducing total weight bytes; only revisit it if staying f32.
    def build(single_buffer_weights):
        if single_buffer_weights:
            # Grid-invariant weight/bias blocks: single-buffer them so the
            # real F=2048 weight footprint is halved (never re-fetched).
            const_spec = lambda shape: pl.BlockSpec(
                shape, lambda b: (0, 0), pipeline_mode=pl.Buffered(1))
        else:
            const_spec = lambda shape: pl.BlockSpec(shape, lambda b: (0, 0))
        return pl.pallas_call(
            _pcg_kernel,
            out_shape=jax.ShapeDtypeStruct((b_pad, OUT_PAD), jnp.float32),
            grid=(num_tiles,),
            in_specs=[
                pl.BlockSpec((tile_b, E), lambda b: (b, 0)),   # x batch tile
                const_spec((E, F)),        # fused Wv@Wo@W1 (bf16)
                const_spec((F, F)),        # W2 (bf16)
                const_spec((F, OUT_PAD)),  # W3, lane-padded to 128 (bf16)
                const_spec((3, BIAS_W)),   # f32 bias slab
            ],
            out_specs=pl.BlockSpec((tile_b, OUT_PAD), lambda b: (b, 0)),
            compiler_params=pltpu.CompilerParams(
                dimension_semantics=semantics,
                vmem_limit_bytes=vmem_limit),
            cost_estimate=pl.CostEstimate(
                flops=flops, transcendentals=0, bytes_accessed=bytes_accessed),
        )

    try:
        out = build(single_buffer_weights=True)(x2d, wf, w2, w3p, bias)
    except Exception:
        # TODO(synk): remove this fallback once pl.Buffered(1) single-buffering
        # is confirmed on the deployment jax build; it only affects VMEM
        # footprint at the real F=2048, not correctness.
        out = build(single_buffer_weights=False)(x2d, wf, w2, w3p, bias)

    # glue: drop batch/lane padding, view(-1, P, 3)
    return out[:b_in, :OUT].reshape(b_in, P, 3)


def init_raw_params(key):
    """Synthetic parameters in PyTorch layout, pre-transposed to (in, out)
    so every layer is y = x @ W + b.  Biases are (1, N)."""
    ks = jax.random.split(key, 14)
    w = lambda k, shape, s=0.05: (s * jax.random.normal(k, shape)).astype(jnp.float32)
    wq, wk, wv = w(ks[0], (E, E)), w(ks[1], (E, E)), w(ks[2], (E, E))
    bq, bk, bv = w(ks[3], (1, E)), w(ks[4], (1, E)), w(ks[5], (1, E))
    wo, bo     = w(ks[6], (E, E)), w(ks[7], (1, E))
    w1, b1     = w(ks[8], (E, F)), w(ks[9], (1, F))
    w2, b2     = w(ks[10], (F, F)), w(ks[11], (1, F))
    w3, b3     = w(ks[12], (F, OUT)), w(ks[13], (1, OUT))
    return (wq, bq, wk, bk, wv, bv, wo, bo, w1, b1, w2, b2, w3, b3)


def pack_params(raw, dtype=COMPUTE_DTYPE):
    """Offline fusion + padding of the raw parameters for the kernel.

    Exact S==1 simplifications:
      * softmax over one key == 1  ->  attention output == V projection
        (q/k projections and the score/softmax path are dead and dropped);
      * V-proj -> out-proj -> Linear1 has no nonlinearity in between, so the
        three weights fold into one (E, F) weight + (1, F) bias.
    Zero padding (mathematically exact):
      * last-matmul N: OUT=48 -> OUT_PAD=128 (lane-dense stores).
    Weights are cast to `dtype` (bf16) AFTER the f32 fold; biases stay f32.
    """
    (wq, bq, wk, bk, wv, bv, wo, bo, w1, b1, w2, b2, w3, b3) = raw
    wf = (wv @ wo) @ w1                       # (E, F)
    bf = (bv @ wo + bo) @ w1 + b1             # (1, F)

    w3_pad = jnp.zeros((F, OUT_PAD), jnp.float32).at[:, :OUT].set(w3)

    bias = jnp.zeros((3, BIAS_W), jnp.float32)
    bias = bias.at[0, :F].set(bf[0])
    bias = bias.at[1, :F].set(b2[0])
    bias = bias.at[2, :OUT].set(b3[0])

    return (wf.astype(dtype), w2.astype(dtype), w3_pad.astype(dtype), bias)


def reference_forward(x, raw):
    """Pure-JAX f32 reference implementing the full (general) MHA + MLP math."""
    (wq, bq, wk, bk, wv, bv, wo, bo, w1, b1, w2, b2, w3, b3) = raw
    b_in, s_in, _ = x.shape
    q = x @ wq + bq
    k = x @ wk + bk
    v = x @ wv + bv
    qh = q.reshape(b_in, s_in, H, DH).transpose(0, 2, 1, 3)
    kh = k.reshape(b_in, s_in, H, DH).transpose(0, 2, 1, 3)
    vh = v.reshape(b_in, s_in, H, DH).transpose(0, 2, 1, 3)
    s = jnp.einsum("bhqd,bhkd->bhqk", qh, kh) / jnp.sqrt(jnp.float32(DH))
    p = jax.nn.softmax(s, axis=-1)
    a = jnp.einsum("bhqk,bhkd->bhqd", p, vh)
    a = a.transpose(0, 2, 1, 3).reshape(b_in, s_in, E)
    o = (a @ wo + bo).reshape(b_in, s_in * E)
    leaky = lambda t: jnp.maximum(t, 0.2 * t)
    h1 = leaky(o @ w1 + b1)
    h2 = leaky(h1 @ w2 + b2)
    return (h2 @ w3 + b3).reshape(b_in, P, 3)


if __name__ == "__main__":
    key = jax.random.PRNGKey(0)
    kx, kp = jax.random.split(key)
    x = jax.random.normal(kx, (B, S, E), dtype=jnp.float32)
    raw = init_raw_params(kp)
    packed = pack_params(raw)

    out = jax.block_until_ready(point_cloud_forward(x, packed))
    ref = jax.block_until_ready(reference_forward(x, raw))

    assert out.shape == (B, P, 3), out.shape
    tol = 1e-4 if COMPUTE_DTYPE == jnp.float32 else 2e-2   # bf16 weights -> 2e-2
    np.testing.assert_allclose(np.asarray(out), np.asarray(ref), rtol=tol, atol=tol)
    print("KERNEL_OK")
</pallas_src>

<mosaic_0001>
module attributes {stable_mosaic.version = 11 : i64} {
  func.func @_pcg_kernel(%arg0: i32, %arg1: memref<8x64xf32, #tpu.memory_space<vmem>>, %arg2: memref<64x128xbf16, #tpu.memory_space<vmem>>, %arg3: memref<128x128xbf16, #tpu.memory_space<vmem>>, %arg4: memref<128x128xbf16, #tpu.memory_space<vmem>>, %arg5: memref<3x128xf32, #tpu.memory_space<vmem>>, %arg6: memref<8x128xf32, #tpu.memory_space<vmem>>) attributes {dimension_semantics = [#tpu.dimension_semantics<arbitrary>], iteration_bounds = array<i64: 1>, scalar_prefetch = 0 : i64, scratch_operands = 0 : i64, tpu.core_type = #tpu.core_type<tc>, window_params = [{transform_indices = @transform_0, window_bounds = array<i64: 8, 64>}, {pipeline_mode = #tpu.pipeline_mode<synchronous>, transform_indices = @transform_1, window_bounds = array<i64: 64, 128>}, {pipeline_mode = #tpu.pipeline_mode<synchronous>, transform_indices = @transform_2, window_bounds = array<i64: 128, 128>}, {pipeline_mode = #tpu.pipeline_mode<synchronous>, transform_indices = @transform_3, window_bounds = array<i64: 128, 128>}, {pipeline_mode = #tpu.pipeline_mode<synchronous>, transform_indices = @transform_4, window_bounds = array<i64: 3, 128>}, {transform_indices = @transform_5, window_bounds = array<i64: 8, 128>}]} {
    %c0 = arith.constant 0 : index
    %c0_0 = arith.constant 0 : index
    %0 = vector.load %arg1[%c0, %c0_0] : memref<8x64xf32, #tpu.memory_space<vmem>>, vector<8x64xf32>
    %1 = arith.truncf %0 : vector<8x64xf32> to vector<8x64xbf16>
    %c0_1 = arith.constant 0 : index
    %c0_2 = arith.constant 0 : index
    %2 = vector.load %arg2[%c0_1, %c0_2] : memref<64x128xbf16, #tpu.memory_space<vmem>>, vector<64x128xbf16>
    %cst = arith.constant dense<0.000000e+00> : vector<8x128xf32>
    %3 = tpu.matmul %1, %2, %cst {dimension_numbers = #tpu.dot_dimension_numbers<[1], [0], [0], [1], [0, 0, 1, 1], [], []>} : vector<8x64xbf16>, vector<64x128xbf16>, vector<8x128xf32> -> vector<8x128xf32>
    %c0_3 = arith.constant 0 : index
    %c0_4 = arith.constant 0 : index
    %4 = vector.load %arg5[%c0_3, %c0_4] : memref<3x128xf32, #tpu.memory_space<vmem>>, vector<1x128xf32>
    %5 = vector.broadcast %4 : vector<1x128xf32> to vector<8x128xf32>
    %6 = arith.addf %3, %5 : vector<8x128xf32>
    %cst_5 = arith.constant 2.000000e-01 : f32
    %7 = vector.broadcast %cst_5 : f32 to vector<8x128xf32>
    %8 = arith.mulf %7, %6 : vector<8x128xf32>
    %9 = arith.maximumf %6, %8 : vector<8x128xf32>
    %10 = arith.truncf %9 : vector<8x128xf32> to vector<8x128xbf16>
    %c0_6 = arith.constant 0 : index
    %c0_7 = arith.constant 0 : index
    %11 = vector.load %arg3[%c0_6, %c0_7] : memref<128x128xbf16, #tpu.memory_space<vmem>>, vector<128x128xbf16>
    %cst_8 = arith.constant dense<0.000000e+00> : vector<8x128xf32>
    %12 = tpu.matmul %10, %11, %cst_8 {dimension_numbers = #tpu.dot_dimension_numbers<[1], [0], [0], [1], [0, 0, 1, 1], [], []>} : vector<8x128xbf16>, vector<128x128xbf16>, vector<8x128xf32> -> vector<8x128xf32>
    %c1 = arith.constant 1 : index
    %c0_9 = arith.constant 0 : index
    %13 = vector.load %arg5[%c1, %c0_9] : memref<3x128xf32, #tpu.memory_space<vmem>>, vector<1x128xf32>
    %14 = vector.broadcast %13 : vector<1x128xf32> to vector<8x128xf32>
    %15 = arith.addf %12, %14 : vector<8x128xf32>
    %cst_10 = arith.constant 2.000000e-01 : f32
    %16 = vector.broadcast %cst_10 : f32 to vector<8x128xf32>
    %17 = arith.mulf %16, %15 : vector<8x128xf32>
    %18 = arith.maximumf %15, %17 : vector<8x128xf32>
    %19 = arith.truncf %18 : vector<8x128xf32> to vector<8x128xbf16>
    %c0_11 = arith.constant 0 : index
    %c0_12 = arith.constant 0 : index
    %20 = vector.load %arg4[%c0_11, %c0_12] : memref<128x128xbf16, #tpu.memory_space<vmem>>, vector<128x128xbf16>
    %cst_13 = arith.constant dense<0.000000e+00> : vector<8x128xf32>
    %21 = tpu.matmul %19, %20, %cst_13 {dimension_numbers = #tpu.dot_dimension_numbers<[1], [0], [0], [1], [0, 0, 1, 1], [], []>} : vector<8x128xbf16>, vector<128x128xbf16>, vector<8x128xf32> -> vector<8x128xf32>
    %c2 = arith.constant 2 : index
    %c0_14 = arith.constant 0 : index
    %22 = vector.load %arg5[%c2, %c0_14] : memref<3x128xf32, #tpu.memory_space<vmem>>, vector<1x128xf32>
    %23 = vector.broadcast %22 : vector<1x128xf32> to vector<8x128xf32>
    %24 = arith.addf %21, %23 : vector<8x128xf32>
    %c0_15 = arith.constant 0 : index
    %c0_16 = arith.constant 0 : index
    %25 = vector.load %arg6[%c0_15, %c0_16] : memref<8x128xf32, #tpu.memory_space<vmem>>, vector<8x128xf32>
    tpu.vector_store %arg6[%c0_15, %c0_16], %24 {strides = array<i32>} : memref<8x128xf32, #tpu.memory_space<vmem>>, vector<8x128xf32>,
    return
  }
  func.func @transform_0(%arg0: i32) -> (i32, i32) {
    %c0_i32 = arith.constant 0 : i32
    %c0_i32_0 = arith.constant 0 : i32
    return %arg0, %c0_i32 : i32, i32
  }
  func.func @transform_1(%arg0: i32) -> (i32, i32) {
    %c0_i32 = arith.constant 0 : i32
    %c0_i32_0 = arith.constant 0 : i32
    %c0_i32_1 = arith.constant 0 : i32
    return %c0_i32, %c0_i32_0 : i32, i32
  }
  func.func @transform_2(%arg0: i32) -> (i32, i32) {
    %c0_i32 = arith.constant 0 : i32
    %c0_i32_0 = arith.constant 0 : i32
    %c0_i32_1 = arith.constant 0 : i32
    return %c0_i32, %c0_i32_0 : i32, i32
  }
  func.func @transform_3(%arg0: i32) -> (i32, i32) {
    %c0_i32 = arith.constant 0 : i32
    %c0_i32_0 = arith.constant 0 : i32
    %c0_i32_1 = arith.constant 0 : i32
    return %c0_i32, %c0_i32_0 : i32, i32
  }
  func.func @transform_4(%arg0: i32) -> (i32, i32) {
    %c0_i32 = arith.constant 0 : i32
    %c0_i32_0 = arith.constant 0 : i32
    %c0_i32_1 = arith.constant 0 : i32
    return %c0_i32, %c0_i32_0 : i32, i32
  }
  func.func @transform_5(%arg0: i32) -> (i32, i32) {
    %c0_i32 = arith.constant 0 : i32
    %c0_i32_0 = arith.constant 0 : i32
    return %arg0, %c0_i32 : i32, i32
  }
}

module attributes {stable_mosaic.version = 11 : i64} {
  func.func @_pcg_kernel(%arg0: i32, %arg1: memref<8x64xf32, #tpu.memory_space<vmem>>, %arg2: memref<64x128xbf16, #tpu.memory_space<vmem>>, %arg3: memref<128x128xbf16, #tpu.memory_space<vmem>>, %arg4: memref<128x128xbf16, #tpu.memory_space<vmem>>, %arg5: memref<3x128xf32, #tpu.memory_space<vmem>>, %arg6: memref<8x128xf32, #tpu.memory_space<vmem>>) attributes {dimension_semantics = [#tpu.dimension_semantics<arbitrary>], iteration_bounds = array<i64: 1>, scalar_prefetch = 0 : i64, scratch_operands = 0 : i64, tpu.core_type = #tpu.core_type<tc>, window_params = [{transform_indices = @transform_0, window_bounds = array<i64: 8, 64>}, {pipeline_mode = #tpu.pipeline_mode<synchronous>, transform_indices = @transform_1, window_bounds = array<i64: 64, 128>}, {pipeline_mode = #tpu.pipeline_mode<synchronous>, transform_indices = @transform_2, window_bounds = array<i64: 128, 128>}, {pipeline_mode = #tpu.pipeline_mode<synchronous>, transform_indices = @transform_3, window_bounds = array<i64: 128, 128>}, {pipeline_mode = #tpu.pipeline_mode<synchronous>, transform_indices = @transform_4, window_bounds = array<i64: 3, 128>}, {transform_indices = @transform_5, window_bounds = array<i64: 8, 128>}]} {
    %c0 = arith.constant 0 : index
    %c0_0 = arith.constant 0 : index
    %0 = vector.load %arg1[%c0, %c0_0] : memref<8x64xf32, #tpu.memory_space<vmem>>, vector<8x64xf32>
    %1 = arith.truncf %0 : vector<8x64xf32> to vector<8x64xbf16>
    %c0_1 = arith.constant 0 : index
    %c0_2 = arith.constant 0 : index
    %2 = vector.load %arg2[%c0_1, %c0_2] : memref<64x128xbf16, #tpu.memory_space<vmem>>, vector<64x128xbf16>
    %cst = arith.constant dense<0.000000e+00> : vector<8x128xf32>
    %3 = tpu.matmul %1, %2, %cst {dimension_numbers = #tpu.dot_dimension_numbers<[1], [0], [0], [1], [0, 0, 1, 1], [], []>} : vector<8x64xbf16>, vector<64x128xbf16>, vector<8x128xf32> -> vector<8x128xf32>
    %c0_3 = arith.constant 0 : index
    %c0_4 = arith.constant 0 : index
    %4 = vector.load %arg5[%c0_3, %c0_4] : memref<3x128xf32, #tpu.memory_space<vmem>>, vector<1x128xf32>
    %5 = vector.broadcast %4 : vector<1x128xf32> to vector<8x128xf32>
    %6 = arith.addf %3, %5 : vector<8x128xf32>
    %cst_5 = arith.constant 2.000000e-01 : f32
    %7 = vector.broadcast %cst_5 : f32 to vector<8x128xf32>
    %8 = arith.mulf %7, %6 : vector<8x128xf32>
    %9 = arith.maximumf %6, %8 : vector<8x128xf32>
    %10 = arith.truncf %9 : vector<8x128xf32> to vector<8x128xbf16>
    %c0_6 = arith.constant 0 : index
    %c0_7 = arith.constant 0 : index
    %11 = vector.load %arg3[%c0_6, %c0_7] : memref<128x128xbf16, #tpu.memory_space<vmem>>, vector<128x128xbf16>
    %cst_8 = arith.constant dense<0.000000e+00> : vector<8x128xf32>
    %12 = tpu.matmul %10, %11, %cst_8 {dimension_numbers = #tpu.dot_dimension_numbers<[1], [0], [0], [1], [0, 0, 1, 1], [], []>} : vector<8x128xbf16>, vector<128x128xbf16>, vector<8x128xf32> -> vector<8x128xf32>
    %c1 = arith.constant 1 : index
    %c0_9 = arith.constant 0 : index
    %13 = vector.load %arg5[%c1, %c0_9] : memref<3x128xf32, #tpu.memory_space<vmem>>, vector<1x128xf32>
    %14 = vector.broadcast %13 : vector<1x128xf32> to vector<8x128xf32>
    %15 = arith.addf %12, %14 : vector<8x128xf32>
    %cst_10 = arith.constant 2.000000e-01 : f32
    %16 = vector.broadcast %cst_10 : f32 to vector<8x128xf32>
    %17 = arith.mulf %16, %15 : vector<8x128xf32>
    %18 = arith.maximumf %15, %17 : vector<8x128xf32>
    %19 = arith.truncf %18 : vector<8x128xf32> to vector<8x128xbf16>
    %c0_11 = arith.constant 0 : index
    %c0_12 = arith.constant 0 : index
    %20 = vector.load %arg4[%c0_11, %c0_12] : memref<128x128xbf16, #tpu.memory_space<vmem>>, vector<128x128xbf16>
    %cst_13 = arith.constant dense<0.000000e+00> : vector<8x128xf32>
    %21 = tpu.matmul %19, %20, %cst_13 {dimension_numbers = #tpu.dot_dimension_numbers<[1], [0], [0], [1], [0, 0, 1, 1], [], []>} : vector<8x128xbf16>, vector<128x128xbf16>, vector<8x128xf32> -> vector<8x128xf32>
    %c2 = arith.constant 2 : index
    %c0_14 = arith.constant 0 : index
    %22 = vector.load %arg5[%c2, %c0_14] : memref<3x128xf32, #tpu.memory_space<vmem>>, vector<1x128xf32>
    %23 = vector.broadcast %22 : vector<1x128xf32> to vector<8x128xf32>
    %24 = arith.addf %21, %23 : vector<8x128xf32>
    %c0_15 = arith.constant 0 : index
    %c0_16 = arith.constant 0 : index
    %25 = vector.load %arg6[%c0_15, %c0_16] : memref<8x128xf32, #tpu.memory_space<vmem>>, vector<8x128xf32>
    tpu.vector_store %arg6[%c0_15, %c0_16], %24 {strides = array<i32>} : memref<8x128xf32, #tpu.memory_space<vmem>>, vector<8x128xf32>,
    return
  }
  func.func @transform_0(%arg0: i32) -> (i32, i32) {
    %c0_i32 = arith.constant 0 : i32
    %c0_i32_0 = arith.constant 0 : i32
    return %arg0, %c0_i32 : i32, i32
  }
  func.func @transform_1(%arg0: i32) -> (i32, i32) {
    %c0_i32 = arith.constant 0 : i32
    %c0_i32_0 = arith.constant 0 : i32
    %c0_i32_1 = arith.constant 0 : i32
    return %c0_i32, %c0_i32_0 : i32, i32
  }
  func.func @transform_2(%arg0: i32) -> (i32, i32) {
    %c0_i32 = arith.constant 0 : i32
    %c0_i32_0 = arith.constant 0 : i32
    %c0_i32_1 = arith.constant 0 : i32
    return %c0_i32, %c0_i32_0 : i32, i32
  }
  func.func @transform_3(%arg0: i32) -> (i32, i32) {
    %c0_i32 = arith.constant 0 : i32
    %c0_i32_0 = arith.constant 0 : i32
    %c0_i32_1 = arith.constant 0 : i32
    return %c0_i32, %c0_i32_0 : i32, i32
  }
  func.func @transform_4(%arg0: i32) -> (i32, i32) {
    %c0_i32 = arith.constant 0 : i32
    %c0_i32_0 = arith.constant 0 : i32
    %c0_i32_1 = arith.constant 0 : i32
    return %c0_i32, %c0_i32_0 : i32, i32
  }
  func.func @transform_5(%arg0: i32) -> (i32, i32) {
    %c0_i32 = arith.constant 0 : i32
    %c0_i32_0 = arith.constant 0 : i32
    return %arg0, %c0_i32 : i32, i32
  }
}

</mosaic_0001>

<llo_original>
// kernel: tpu_custom_call.1
$region0: #{tpu_custom_call.1}
  #allocation0 [shape = 'u32[]', space=smem, size = 0x4, offset = 0x4, fixed_abs, tag = 'smem constant byte address 0x4 - core index']
  #allocation1 [shape = 'u32[144,128]{1,0:T(1,128)}', space=vmem, size = 0x12000, scoped, tag = 'internal scratch']
  %s0 = inlined_call_operand.hbm [shape: f32[8,64], index: 0, kind: input, shape index: {}]
  %s1 = inlined_call_operand.hbm [shape: bf16[64,128], index: 1, kind: input, shape index: {}]
  %s2 = inlined_call_operand.hbm [shape: bf16[128,128], index: 2, kind: input, shape index: {}]
  %s3 = inlined_call_operand.hbm [shape: bf16[128,128], index: 3, kind: input, shape index: {}]
  %s4 = inlined_call_operand.vmem [shape: f32[3,128], index: 4, kind: input, shape index: {}]
  %s5 = inlined_call_operand.hbm [shape: f32[8,128], index: 5, kind: output, shape index: {}]
  %s6 = sld [smem:[#allocation0]]
  $region46: #{tpu_custom_call.1} parent=0
    _
  %s8 = ssub.s32 1, %s6
  %s9 = scalar_select 0, %s8, %s6
  $region1: #{tpu_custom_call.1} parent=0
    #allocation2 [shape = 'u8[4096]{0}', space=vmem, size = 0x1000, scoped, tag = 'input window, operand 0, single buffered']
    #allocation3 [shape = 's32[1]{0}', space=sflag, size = 0x4, scoped, tag = 'scoped memory for tpu_custom_call.1']
    #allocation4 [shape = 's32[1]{0}', space=sflag, size = 0x4, scoped, tag = 'scoped memory for tpu_custom_call.1']
    #allocation5 [shape = 'u8[16384]{0}', space=vmem, size = 0x4000, scoped, tag = 'input window, operand 1, single buffered']
    #allocation6 [shape = 's32[1]{0}', space=sflag, size = 0x4, scoped, tag = 'scoped memory for tpu_custom_call.1']
    #allocation7 [shape = 'u8[32768]{0}', space=vmem, size = 0x8000, scoped, tag = 'input window, operand 2, single buffered']
    #allocation8 [shape = 'u8[32768]{0}', space=vmem, size = 0x8000, scoped, tag = 'input window, operand 3, single buffered']
    #allocation9 [shape = 's32[1]{0}', space=sflag, size = 0x4, scoped, tag = 'scoped memory for tpu_custom_call.1']
    #allocation10 [shape = 'u8[4096]{0}', space=vmem, size = 0x1000, scoped, tag = 'output window, operand 0, single buffered']
    %10 = vsyncpa [#allocation3], 0
    %11 = vsyncpa [#allocation6], 0
    %12 = vsyncpa [#allocation9], 0
    %13 = vsyncpa [#allocation4], 0
    // Predicated region
    $region2: #{tpu_custom_call.1} parent=1 // pred_check
      _
    $region3: #{tpu_custom_call.1} parent=1 // pred_check_branch
      %15 = sbr.rel (0) target = $region5
    $region4: #{tpu_custom_call.1} parent=1 // pred_region
      %s17 = ssub.s32 128, 128
      %18 = vsyncadd [#allocation3], %s17
      %s20 = sshll.u32 [#allocation2], 4
      %s21 = int_to_ptr.vmem [resolvable:$true] %s20
      %23 = dma.hbm_to_vmem [thread:$0]  %s0, 128, %s21, [#allocation3]
    $region5: #{tpu_custom_call.1} parent=1 // pred_fallthru
      _
    // Predicated region
    $region6: #{tpu_custom_call.1} parent=1 // pred_check
      _
    $region7: #{tpu_custom_call.1} parent=1 // pred_check_branch
      %25 = sbr.rel (0) target = $region9
    $region8: #{tpu_custom_call.1} parent=1 // pred_region
      %s27 = ssub.s32 512, 512
      %28 = vsyncadd [#allocation6], %s27
      %s29 = sshll.u32 [#allocation5], 4
      %s30 = int_to_ptr.vmem [resolvable:$true] %s29
      %35 = dma.hbm_to_vmem [thread:$0]  %s1, 512, %s30, [#allocation6], 64, 64, 4
    $region9: #{tpu_custom_call.1} parent=1 // pred_fallthru
      _
    // Predicated region
    $region10: #{tpu_custom_call.1} parent=1 // pred_check
      _
    $region11: #{tpu_custom_call.1} parent=1 // pred_check_branch
      %37 = sbr.rel (0) target = $region13
    $region12: #{tpu_custom_call.1} parent=1 // pred_region
      %s39 = ssub.s32 1024, 1024
      %40 = vsyncadd [#allocation6], %s39
      %s41 = sshll.u32 [#allocation7], 4
      %s42 = int_to_ptr.vmem [resolvable:$true] %s41
      %47 = dma.hbm_to_vmem [thread:$0]  %s2, 1024, %s42, [#allocation6], 64, 64, 4
    $region13: #{tpu_custom_call.1} parent=1 // pred_fallthru
      _
    // Predicated region
    $region14: #{tpu_custom_call.1} parent=1 // pred_check
      _
    $region15: #{tpu_custom_call.1} parent=1 // pred_check_branch
      %49 = sbr.rel (0) target = $region17
    $region16: #{tpu_custom_call.1} parent=1 // pred_region
      %s51 = ssub.s32 1024, 1024
      %52 = vsyncadd [#allocation9], %s51
      %s53 = sshll.u32 [#allocation8], 4
      %s54 = int_to_ptr.vmem [resolvable:$true] %s53
      %59 = dma.hbm_to_vmem [thread:$0]  %s3, 1024, %s54, [#allocation9], 64, 64, 4
    $region17: #{tpu_custom_call.1} parent=1 // pred_fallthru
      _
    // Predicated region
    $region18: #{tpu_custom_call.1} parent=1 // pred_check
      _
    $region19: #{tpu_custom_call.1} parent=1 // pred_check_branch
      %61 = sbr.rel (0) target = $region21
    $region20: #{tpu_custom_call.1} parent=1 // pred_region
      _
    $region21: #{tpu_custom_call.1} parent=1 // pred_fallthru
      _
    // Predicated region
    $region22: #{tpu_custom_call.1} parent=1 // pred_check
      _
    $region23: #{tpu_custom_call.1} parent=1 // pred_check_branch
      %63 = sbr.rel (0) target = $region25
    $region24: #{tpu_custom_call.1} parent=1 // pred_region
      %64 = dma.done [#allocation3], 128
    $region25: #{tpu_custom_call.1} parent=1 // pred_fallthru
      _
    // Predicated region
    $region26: #{tpu_custom_call.1} parent=1 // pred_check
      _
    $region27: #{tpu_custom_call.1} parent=1 // pred_check_branch
      %66 = sbr.rel (0) target = $region29
    $region28: #{tpu_custom_call.1} parent=1 // pred_region
      %67 = dma.done [#allocation6], 512
    $region29: #{tpu_custom_call.1} parent=1 // pred_fallthru
      _
    // Predicated region
    $region30: #{tpu_custom_call.1} parent=1 // pred_check
      _
    $region31: #{tpu_custom_call.1} parent=1 // pred_check_branch
      %69 = sbr.rel (0) target = $region33
    $region32: #{tpu_custom_call.1} parent=1 // pred_region
      %70 = dma.done [#allocation6], 1024
    $region33: #{tpu_custom_call.1} parent=1 // pred_fallthru
      _
    // Predicated region
    $region34: #{tpu_custom_call.1} parent=1 // pred_check
      _
    $region35: #{tpu_custom_call.1} parent=1 // pred_check_branch
      %72 = sbr.rel (0) target = $region37
    $region36: #{tpu_custom_call.1} parent=1 // pred_region
      %73 = dma.done [#allocation9], 1024
    $region37: #{tpu_custom_call.1} parent=1 // pred_fallthru
      _
    %v75 = vld [vmem:[#allocation2] sm:$0xff]
    %v76 = vpack.c.bf16 %v75, %v75
    %v77 = vld [vmem:[#allocation5] sm:$0xf]
    %v78 = vld [vmem:[#allocation5 + $0x4] sm:$0xf]
    %v79 = vld [vmem:[#allocation5 + $0x8] sm:$0xf]
    %v80 = vld [vmem:[#allocation5 + $0xc] sm:$0xf]
    %v81 = vld [vmem:[#allocation5 + $0x10] sm:$0xf]
    %v82 = vld [vmem:[#allocation5 + $0x14] sm:$0xf]
    %v83 = vld [vmem:[#allocation5 + $0x18] sm:$0xf]
    %v84 = vld [vmem:[#allocation5 + $0x1c] sm:$0xf]
    %v85 = vld [vmem:[%s4] sm:$0x1]
    %v86 = vlaneseq
    %v87 = vshrl.u32 %v86, 7
    %v88 = vsub.s32 0, %v87
    %v89 = vrot.slane %v85, %v88
    %v98 = vunpack.c.l.b16 %v77
    %v99 = vunpack.c.l.b16 %v78
    %v100 = vunpack.c.l.b16 %v79
    %v101 = vunpack.c.l.b16 %v80
    %v102 = vunpack.c.l.b16 %v81
    %v103 = vunpack.c.l.b16 %v82
    %v104 = vunpack.c.l.b16 %v83
    %v105 = vunpack.c.l.b16 %v84
    %v106 = vpack.c.b16 %v99, %v98
    %v107 = vpack.c.b16 %v101, %v100
    %v108 = vpack.c.b16 %v103, %v102
    %v109 = vpack.c.b16 %v105, %v104
    %vm114 = vcmask 523264
    %v116 = vsel %vm114, %v76, 0
    %118 = vmatprep.subr.bf16.mxu0 0
    %119 = vmatpush1.bf16.msra.mxu0 %v106
    %120 = vmatprep.subr.bf16.mxu0 0
    %121 = vmatpush1.bf16.msra.mxu0 %v107
    %122 = vmatprep.subr.bf16.mxu0 0
    %123 = vmatpush1.bf16.msra.mxu0 %v108
    %124 = vmatprep.subr.bf16.mxu0 0
    %125 = vmatpush1.bf16.msra.mxu0 %v109
    %126 = vmatprep.subr.bf16.mxu0 0
    %127 = vmatpush1.bf16.msra.mxu0 0
    %128 = vmatprep.subr.bf16.mxu0 0
    %129 = vmatpush1.bf16.msra.mxu0 0
    %130 = vmatprep.subr.bf16.mxu0 0
    %131 = vmatpush1.bf16.msra.mxu0 0
    %132 = vmatprep.subr.bf16.mxu0 0
    %133 = vmatpush1.bf16.msra.mxu0 0
    %134 = vmatprep.subr.bf16.mxu0 0
    %135 = vmatpush1.bf16.msra.mxu0 0
    %136 = vmatprep.subr.bf16.mxu0 0
    %137 = vmatpush1.bf16.msra.mxu0 0
    %138 = vmatprep.subr.bf16.mxu0 0
    %139 = vmatpush1.bf16.msra.mxu0 0
    %140 = vmatprep.subr.bf16.mxu0 0
    %141 = vmatpush1.bf16.msra.mxu0 0
    %142 = vmatprep.subr.bf16.mxu0 0
    %143 = vmatpush1.bf16.msra.mxu0 0
    %144 = vmatprep.subr.bf16.mxu0 0
    %145 = vmatpush1.bf16.msra.mxu0 0
    %146 = vmatprep.subr.bf16.mxu0 0
    %147 = vmatpush1.bf16.msra.mxu0 0
    %148 = vmatprep.subr.bf16.mxu0 0
    %149 = vmatpush1.bf16.msra.mxu0 0
    %150 = vmatprep.mubr.bf16.mxu0 0
    %151 = vmatmul.mubr.bf16.gmra.mrb[0].mxu0 %v116
    %v152 = vpop.f32.mrb[0].mxu0
    %v153 = vadd.f32 %v89, %v152
    %v154 = vpop.f32.mrb[0].mxu0
    %v155 = vpop.f32.mrb[0].mxu0
    %v156 = vpop.f32.mrb[0].mxu0
    %157 = vdwg.mxu0
    %v158 = vmul.f32 %v153, 0.2
    %v159 = vmax.f32 %v153, %v158
    %v160 = vpack.c.bf16 %v159, %v159
    %v161 = vld [vmem:[#allocation7] sm:$0xf]
    %v162 = vld [vmem:[#allocation7 + $0x4] sm:$0xf]
    %v163 = vld [vmem:[#allocation7 + $0x8] sm:$0xf]
    %v164 = vld [vmem:[#allocation7 + $0xc] sm:$0xf]
    %v165 = vld [vmem:[#allocation7 + $0x10] sm:$0xf]
    %v166 = vld [vmem:[#allocation7 + $0x14] sm:$0xf]
    %v167 = vld [vmem:[#allocation7 + $0x18] sm:$0xf]
    %v168 = vld [vmem:[#allocation7 + $0x1c] sm:$0xf]
    %v169 = vld [vmem:[#allocation7 + $0x20] sm:$0xf]
    %v170 = vld [vmem:[#allocation7 + $0x24] sm:$0xf]
    %v171 = vld [vmem:[#allocation7 + $0x28] sm:$0xf]
    %v172 = vld [vmem:[#allocation7 + $0x2c] sm:$0xf]
    %v173 = vld [vmem:[#allocation7 + $0x30] sm:$0xf]
    %v174 = vld [vmem:[#allocation7 + $0x34] sm:$0xf]
    %v175 = vld [vmem:[#allocation7 + $0x38] sm:$0xf]
    %v176 = vld [vmem:[#allocation7 + $0x3c] sm:$0xf]
    %v177 = vld [vmem:[%s4 + $0x1] sm:$0x1]
    %v178 = vlaneseq
    %v179 = vshrl.u32 %v178, 7
    %v180 = vsub.s32 0, %v179
    %v181 = vrot.slane %v177, %v180
    %v198 = vunpack.c.l.b16 %v161
    %v199 = vunpack.c.l.b16 %v162
    %v200 = vunpack.c.l.b16 %v163
    %v201 = vunpack.c.l.b16 %v164
    %v202 = vunpack.c.l.b16 %v165
    %v203 = vunpack.c.l.b16 %v166
    %v204 = vunpack.c.l.b16 %v167
    %v205 = vunpack.c.l.b16 %v168
    %v206 = vunpack.c.l.b16 %v169
    %v207 = vunpack.c.l.b16 %v170
    %v208 = vunpack.c.l.b16 %v171
    %v209 = vunpack.c.l.b16 %v172
    %v210 = vunpack.c.l.b16 %v173
    %v211 = vunpack.c.l.b16 %v174
    %v212 = vunpack.c.l.b16 %v175
    %v213 = vunpack.c.l.b16 %v176
    %v214 = vpack.c.b16 %v199, %v198
    %v215 = vpack.c.b16 %v201, %v200
    %v216 = vpack.c.b16 %v203, %v202
    %v217 = vpack.c.b16 %v205, %v204
    %v218 = vpack.c.b16 %v207, %v206
    %v219 = vpack.c.b16 %v209, %v208
    %v220 = vpack.c.b16 %v211, %v210
    %v221 = vpack.c.b16 %v213, %v212
    %230 = vmatprep.subr.bf16.mxu0 0
    %231 = vmatpush1.bf16.msra.mxu0 %v214
    %232 = vmatprep.subr.bf16.mxu0 0
    %233 = vmatpush1.bf16.msra.mxu0 %v215
    %234 = vmatprep.subr.bf16.mxu0 0
    %235 = vmatpush1.bf16.msra.mxu0 %v216
    %236 = vmatprep.subr.bf16.mxu0 0
    %237 = vmatpush1.bf16.msra.mxu0 %v217
    %238 = vmatprep.subr.bf16.mxu0 0
    %239 = vmatpush1.bf16.msra.mxu0 %v218
    %240 = vmatprep.subr.bf16.mxu0 0
    %241 = vmatpush1.bf16.msra.mxu0 %v219
    %242 = vmatprep.subr.bf16.mxu0 0
    %243 = vmatpush1.bf16.msra.mxu0 %v220
    %244 = vmatprep.subr.bf16.mxu0 0
    %245 = vmatpush1.bf16.msra.mxu0 %v221
    %246 = vmatprep.subr.bf16.mxu0 0
    %247 = vmatpush1.bf16.msra.mxu0 0
    %248 = vmatprep.subr.bf16.mxu0 0
    %249 = vmatpush1.bf16.msra.mxu0 0
    %250 = vmatprep.subr.bf16.mxu0 0
    %251 = vmatpush1.bf16.msra.mxu0 0
    %252 = vmatprep.subr.bf16.mxu0 0
    %253 = vmatpush1.bf16.msra.mxu0 0
    %254 = vmatprep.subr.bf16.mxu0 0
    %255 = vmatpush1.bf16.msra.mxu0 0
    %256 = vmatprep.subr.bf16.mxu0 0
    %257 = vmatpush1.bf16.msra.mxu0 0
    %258 = vmatprep.subr.bf16.mxu0 0
    %259 = vmatpush1.bf16.msra.mxu0 0
    %260 = vmatprep.subr.bf16.mxu0 0
    %261 = vmatpush1.bf16.msra.mxu0 0
    %262 = vmatprep.mubr.bf16.mxu0 0
    %263 = vmatmul.mubr.bf16.gmra.mrb[0].mxu0 %v160
    %v264 = vpop.f32.mrb[0].mxu0
    %v265 = vadd.f32 %v181, %v264
    %v266 = vpop.f32.mrb[0].mxu0
    %v267 = vpop.f32.mrb[0].mxu0
    %v268 = vpop.f32.mrb[0].mxu0
    %269 = vdwg.mxu0
    %v270 = vmul.f32 %v265, 0.2
    %v271 = vmax.f32 %v265, %v270
    %v272 = vpack.c.bf16 %v271, %v271
    %v273 = vld [vmem:[#allocation8] sm:$0xf]
    %v274 = vld [vmem:[#allocation8 + $0x4] sm:$0xf]
    %v275 = vld [vmem:[#allocation8 + $0x8] sm:$0xf]
    %v276 = vld [vmem:[#allocation8 + $0xc] sm:$0xf]
    %v277 = vld [vmem:[#allocation8 + $0x10] sm:$0xf]
    %v278 = vld [vmem:[#allocation8 + $0x14] sm:$0xf]
    %v279 = vld [vmem:[#allocation8 + $0x18] sm:$0xf]
    %v280 = vld [vmem:[#allocation8 + $0x1c] sm:$0xf]
    %v281 = vld [vmem:[#allocation8 + $0x20] sm:$0xf]
    %v282 = vld [vmem:[#allocation8 + $0x24] sm:$0xf]
    %v283 = vld [vmem:[#allocation8 + $0x28] sm:$0xf]
    %v284 = vld [vmem:[#allocation8 + $0x2c] sm:$0xf]
    %v285 = vld [vmem:[#allocation8 + $0x30] sm:$0xf]
    %v286 = vld [vmem:[#allocation8 + $0x34] sm:$0xf]
    %v287 = vld [vmem:[#allocation8 + $0x38] sm:$0xf]
    %v288 = vld [vmem:[#allocation8 + $0x3c] sm:$0xf]
    %v289 = vld [vmem:[%s4 + $0x2] sm:$0x1]
    %v290 = vlaneseq
    %v291 = vshrl.u32 %v290, 7
    %v292 = vsub.s32 0, %v291
    %v293 = vrot.slane %v289, %v292
    %v310 = vunpack.c.l.b16 %v273
    %v311 = vunpack.c.l.b16 %v274
    %v312 = vunpack.c.l.b16 %v275
    %v313 = vunpack.c.l.b16 %v276
    %v314 = vunpack.c.l.b16 %v277
    %v315 = vunpack.c.l.b16 %v278
    %v316 = vunpack.c.l.b16 %v279
    %v317 = vunpack.c.l.b16 %v280
    %v318 = vunpack.c.l.b16 %v281
    %v319 = vunpack.c.l.b16 %v282
    %v320 = vunpack.c.l.b16 %v283
    %v321 = vunpack.c.l.b16 %v284
    %v322 = vunpack.c.l.b16 %v285
    %v323 = vunpack.c.l.b16 %v286
    %v324 = vunpack.c.l.b16 %v287
    %v325 = vunpack.c.l.b16 %v288
    %v326 = vpack.c.b16 %v311, %v310
    %v327 = vpack.c.b16 %v313, %v312
    %v328 = vpack.c.b16 %v315, %v314
    %v329 = vpack.c.b16 %v317, %v316
    %v330 = vpack.c.b16 %v319, %v318
    %v331 = vpack.c.b16 %v321, %v320
    %v332 = vpack.c.b16 %v323, %v322
    %v333 = vpack.c.b16 %v325, %v324
    %342 = vmatprep.subr.bf16.mxu0 0
    %343 = vmatpush1.bf16.msra.mxu0 %v326
    %344 = vmatprep.subr.bf16.mxu0 0
    %345 = vmatpush1.bf16.msra.mxu0 %v327
    %346 = vmatprep.subr.bf16.mxu0 0
    %347 = vmatpush1.bf16.msra.mxu0 %v328
    %348 = vmatprep.subr.bf16.mxu0 0
    %349 = vmatpush1.bf16.msra.mxu0 %v329
    %350 = vmatprep.subr.bf16.mxu0 0
    %351 = vmatpush1.bf16.msra.mxu0 %v330
    %352 = vmatprep.subr.bf16.mxu0 0
    %353 = vmatpush1.bf16.msra.mxu0 %v331
    %354 = vmatprep.subr.bf16.mxu0 0
    %355 = vmatpush1.bf16.msra.mxu0 %v332
    %356 = vmatprep.subr.bf16.mxu0 0
    %357 = vmatpush1.bf16.msra.mxu0 %v333
    %358 = vmatprep.subr.bf16.mxu0 0
    %359 = vmatpush1.bf16.msra.mxu0 0
    %360 = vmatprep.subr.bf16.mxu0 0
    %361 = vmatpush1.bf16.msra.mxu0 0
    %362 = vmatprep.subr.bf16.mxu0 0
    %363 = vmatpush1.bf16.msra.mxu0 0
    %364 = vmatprep.subr.bf16.mxu0 0
    %365 = vmatpush1.bf16.msra.mxu0 0
    %366 = vmatprep.subr.bf16.mxu0 0
    %367 = vmatpush1.bf16.msra.mxu0 0
    %368 = vmatprep.subr.bf16.mxu0 0
    %369 = vmatpush1.bf16.msra.mxu0 0
    %370 = vmatprep.subr.bf16.mxu0 0
    %371 = vmatpush1.bf16.msra.mxu0 0
    %372 = vmatprep.subr.bf16.mxu0 0
    %373 = vmatpush1.bf16.msra.mxu0 0
    %374 = vmatprep.mubr.bf16.mxu0 0
    %375 = vmatmul.mubr.bf16.gmra.mrb[0].mxu0 %v272
    %v376 = vpop.f32.mrb[0].mxu0
    %v377 = vadd.f32 %v293, %v376
    %v378 = vpop.f32.mrb[0].mxu0
    %v379 = vpop.f32.mrb[0].mxu0
    %v380 = vpop.f32.mrb[0].mxu0
    %381 = vdwg.mxu0
    %382 = vst [vmem:[#allocation10] sm:$0xff] %v377
    // Predicated region
    $region38: #{tpu_custom_call.1} parent=1 // pred_check
      _
    $region39: #{tpu_custom_call.1} parent=1 // pred_check_branch
      %384 = sbr.rel (0) target = $region41
    $region40: #{tpu_custom_call.1} parent=1 // pred_region
      %s386 = ssub.s32 128, 128
      %387 = vsyncadd [#allocation4], %s386
      %s389 = sshll.u32 [#allocation10], 4
      %s390 = int_to_ptr.vmem [resolvable:$true] %s389
      %392 = dma.vmem_to_hbm [thread:$0]  %s390, 128, %s5, [#allocation4]
    $region41: #{tpu_custom_call.1} parent=1 // pred_fallthru
      _
    // Predicated region
    $region42: #{tpu_custom_call.1} parent=1 // pred_check
      _
    $region43: #{tpu_custom_call.1} parent=1 // pred_check_branch
      %394 = sbr.rel (0) target = $region45
    $region44: #{tpu_custom_call.1} parent=1 // pred_region
      %395 = dma.done [#allocation4], 128
    $region45: #{tpu_custom_call.1} parent=1 // pred_fallthru
      _
    %396 = vsyncpa [#allocation3], 1
    %397 = vsyncpa [#allocation6], 1
    %398 = vsyncpa [#allocation9], 1
    %399 = vsyncpa [#allocation4], 1

// kernel: tpu_custom_call.1
$region0: #{tpu_custom_call.1}
  #allocation0 [shape = 'u32[]', space=smem, size = 0x4, offset = 0x4, fixed_abs, tag = 'smem constant byte address 0x4 - core index']
  #allocation1 [shape = 'u32[144,128]{1,0:T(1,128)}', space=vmem, size = 0x12000, scoped, tag = 'internal scratch']
  %s0 = inlined_call_operand.hbm [shape: f32[8,64], index: 0, kind: input, shape index: {}]
  %s1 = inlined_call_operand.hbm [shape: bf16[64,128], index: 1, kind: input, shape index: {}]
  %s2 = inlined_call_operand.hbm [shape: bf16[128,128], index: 2, kind: input, shape index: {}]
  %s3 = inlined_call_operand.hbm [shape: bf16[128,128], index: 3, kind: input, shape index: {}]
  %s4 = inlined_call_operand.vmem [shape: f32[3,128], index: 4, kind: input, shape index: {}]
  %s5 = inlined_call_operand.hbm [shape: f32[8,128], index: 5, kind: output, shape index: {}]
  %s6 = sld [smem:[#allocation0]]
  $region46: #{tpu_custom_call.1} parent=0
    _
  %s8 = ssub.s32 1, %s6
  %s9 = scalar_select 0, %s8, %s6
  $region1: #{tpu_custom_call.1} parent=0
    #allocation2 [shape = 'u8[4096]{0}', space=vmem, size = 0x1000, scoped, tag = 'input window, operand 0, single buffered']
    #allocation3 [shape = 's32[1]{0}', space=sflag, size = 0x4, scoped, tag = 'scoped memory for tpu_custom_call.1']
    #allocation4 [shape = 's32[1]{0}', space=sflag, size = 0x4, scoped, tag = 'scoped memory for tpu_custom_call.1']
    #allocation5 [shape = 'u8[16384]{0}', space=vmem, size = 0x4000, scoped, tag = 'input window, operand 1, single buffered']
    #allocation6 [shape = 's32[1]{0}', space=sflag, size = 0x4, scoped, tag = 'scoped memory for tpu_custom_call.1']
    #allocation7 [shape = 'u8[32768]{0}', space=vmem, size = 0x8000, scoped, tag = 'input window, operand 2, single buffered']
    #allocation8 [shape = 'u8[32768]{0}', space=vmem, size = 0x8000, scoped, tag = 'input window, operand 3, single buffered']
    #allocation9 [shape = 's32[1]{0}', space=sflag, size = 0x4, scoped, tag = 'scoped memory for tpu_custom_call.1']
    #allocation10 [shape = 'u8[4096]{0}', space=vmem, size = 0x1000, scoped, tag = 'output window, operand 0, single buffered']
    %10 = vsyncpa [#allocation3], 0
    %11 = vsyncpa [#allocation6], 0
    %12 = vsyncpa [#allocation9], 0
    %13 = vsyncpa [#allocation4], 0
    // Predicated region
    $region2: #{tpu_custom_call.1} parent=1 // pred_check
      _
    $region3: #{tpu_custom_call.1} parent=1 // pred_check_branch
      %15 = sbr.rel (0) target = $region5
    $region4: #{tpu_custom_call.1} parent=1 // pred_region
      %s17 = ssub.s32 128, 128
      %18 = vsyncadd [#allocation3], %s17
      %s20 = sshll.u32 [#allocation2], 4
      %s21 = int_to_ptr.vmem [resolvable:$true] %s20
      %23 = dma.hbm_to_vmem [thread:$0]  %s0, 128, %s21, [#allocation3]
    $region5: #{tpu_custom_call.1} parent=1 // pred_fallthru
      _
    // Predicated region
    $region6: #{tpu_custom_call.1} parent=1 // pred_check
      _
    $region7: #{tpu_custom_call.1} parent=1 // pred_check_branch
      %25 = sbr.rel (0) target = $region9
    $region8: #{tpu_custom_call.1} parent=1 // pred_region
      %s27 = ssub.s32 512, 512
      %28 = vsyncadd [#allocation6], %s27
      %s29 = sshll.u32 [#allocation5], 4
      %s30 = int_to_ptr.vmem [resolvable:$true] %s29
      %35 = dma.hbm_to_vmem [thread:$0]  %s1, 512, %s30, [#allocation6], 64, 64, 4
    $region9: #{tpu_custom_call.1} parent=1 // pred_fallthru
      _
    // Predicated region
    $region10: #{tpu_custom_call.1} parent=1 // pred_check
      _
    $region11: #{tpu_custom_call.1} parent=1 // pred_check_branch
      %37 = sbr.rel (0) target = $region13
    $region12: #{tpu_custom_call.1} parent=1 // pred_region
      %s39 = ssub.s32 1024, 1024
      %40 = vsyncadd [#allocation6], %s39
      %s41 = sshll.u32 [#allocation7], 4
      %s42 = int_to_ptr.vmem [resolvable:$true] %s41
      %47 = dma.hbm_to_vmem [thread:$0]  %s2, 1024, %s42, [#allocation6], 64, 64, 4
    $region13: #{tpu_custom_call.1} parent=1 // pred_fallthru
      _
    // Predicated region
    $region14: #{tpu_custom_call.1} parent=1 // pred_check
      _
    $region15: #{tpu_custom_call.1} parent=1 // pred_check_branch
      %49 = sbr.rel (0) target = $region17
    $region16: #{tpu_custom_call.1} parent=1 // pred_region
      %s51 = ssub.s32 1024, 1024
      %52 = vsyncadd [#allocation9], %s51
      %s53 = sshll.u32 [#allocation8], 4
      %s54 = int_to_ptr.vmem [resolvable:$true] %s53
      %59 = dma.hbm_to_vmem [thread:$0]  %s3, 1024, %s54, [#allocation9], 64, 64, 4
    $region17: #{tpu_custom_call.1} parent=1 // pred_fallthru
      _
    // Predicated region
    $region18: #{tpu_custom_call.1} parent=1 // pred_check
      _
    $region19: #{tpu_custom_call.1} parent=1 // pred_check_branch
      %61 = sbr.rel (0) target = $region21
    $region20: #{tpu_custom_call.1} parent=1 // pred_region
      _
    $region21: #{tpu_custom_call.1} parent=1 // pred_fallthru
      _
    // Predicated region
    $region22: #{tpu_custom_call.1} parent=1 // pred_check
      _
    $region23: #{tpu_custom_call.1} parent=1 // pred_check_branch
      %63 = sbr.rel (0) target = $region25
    $region24: #{tpu_custom_call.1} parent=1 // pred_region
      %64 = dma.done [#allocation3], 128
    $region25: #{tpu_custom_call.1} parent=1 // pred_fallthru
      _
    // Predicated region
    $region26: #{tpu_custom_call.1} parent=1 // pred_check
      _
    $region27: #{tpu_custom_call.1} parent=1 // pred_check_branch
      %66 = sbr.rel (0) target = $region29
    $region28: #{tpu_custom_call.1} parent=1 // pred_region
      %67 = dma.done [#allocation6], 512
    $region29: #{tpu_custom_call.1} parent=1 // pred_fallthru
      _
    // Predicated region
    $region30: #{tpu_custom_call.1} parent=1 // pred_check
      _
    $region31: #{tpu_custom_call.1} parent=1 // pred_check_branch
      %69 = sbr.rel (0) target = $region33
    $region32: #{tpu_custom_call.1} parent=1 // pred_region
      %70 = dma.done [#allocation6], 1024
    $region33: #{tpu_custom_call.1} parent=1 // pred_fallthru
      _
    // Predicated region
    $region34: #{tpu_custom_call.1} parent=1 // pred_check
      _
    $region35: #{tpu_custom_call.1} parent=1 // pred_check_branch
      %72 = sbr.rel (0) target = $region37
    $region36: #{tpu_custom_call.1} parent=1 // pred_region
      %73 = dma.done [#allocation9], 1024
    $region37: #{tpu_custom_call.1} parent=1 // pred_fallthru
      _
    %v75 = vld [vmem:[#allocation2] sm:$0xff]
    %v76 = vpack.c.bf16 %v75, %v75
    %v77 = vld [vmem:[#allocation5] sm:$0xf]
    %v78 = vld [vmem:[#allocation5 + $0x4] sm:$0xf]
    %v79 = vld [vmem:[#allocation5 + $0x8] sm:$0xf]
    %v80 = vld [vmem:[#allocation5 + $0xc] sm:$0xf]
    %v81 = vld [vmem:[#allocation5 + $0x10] sm:$0xf]
    %v82 = vld [vmem:[#allocation5 + $0x14] sm:$0xf]
    %v83 = vld [vmem:[#allocation5 + $0x18] sm:$0xf]
    %v84 = vld [vmem:[#allocation5 + $0x1c] sm:$0xf]
    %v85 = vld [vmem:[%s4] sm:$0x1]
    %v86 = vlaneseq
    %v87 = vshrl.u32 %v86, 7
    %v88 = vsub.s32 0, %v87
    %v89 = vrot.slane %v85, %v88
    %v98 = vunpack.c.l.b16 %v77
    %v99 = vunpack.c.l.b16 %v78
    %v100 = vunpack.c.l.b16 %v79
    %v101 = vunpack.c.l.b16 %v80
    %v102 = vunpack.c.l.b16 %v81
    %v103 = vunpack.c.l.b16 %v82
    %v104 = vunpack.c.l.b16 %v83
    %v105 = vunpack.c.l.b16 %v84
    %v106 = vpack.c.b16 %v99, %v98
    %v107 = vpack.c.b16 %v101, %v100
    %v108 = vpack.c.b16 %v103, %v102
    %v109 = vpack.c.b16 %v105, %v104
    %vm114 = vcmask 523264
    %v116 = vsel %vm114, %v76, 0
    %118 = vmatprep.subr.bf16.mxu0 0
    %119 = vmatpush1.bf16.msra.mxu0 %v106
    %120 = vmatprep.subr.bf16.mxu0 0
    %121 = vmatpush1.bf16.msra.mxu0 %v107
    %122 = vmatprep.subr.bf16.mxu0 0
    %123 = vmatpush1.bf16.msra.mxu0 %v108
    %124 = vmatprep.subr.bf16.mxu0 0
    %125 = vmatpush1.bf16.msra.mxu0 %v109
    %126 = vmatprep.subr.bf16.mxu0 0
    %127 = vmatpush1.bf16.msra.mxu0 0
    %128 = vmatprep.subr.bf16.mxu0 0
    %129 = vmatpush1.bf16.msra.mxu0 0
    %130 = vmatprep.subr.bf16.mxu0 0
    %131 = vmatpush1.bf16.msra.mxu0 0
    %132 = vmatprep.subr.bf16.mxu0 0
    %133 = vmatpush1.bf16.msra.mxu0 0
    %134 = vmatprep.subr.bf16.mxu0 0
    %135 = vmatpush1.bf16.msra.mxu0 0
    %136 = vmatprep.subr.bf16.mxu0 0
    %137 = vmatpush1.bf16.msra.mxu0 0
    %138 = vmatprep.subr.bf16.mxu0 0
    %139 = vmatpush1.bf16.msra.mxu0 0
    %140 = vmatprep.subr.bf16.mxu0 0
    %141 = vmatpush1.bf16.msra.mxu0 0
    %142 = vmatprep.subr.bf16.mxu0 0
    %143 = vmatpush1.bf16.msra.mxu0 0
    %144 = vmatprep.subr.bf16.mxu0 0
    %145 = vmatpush1.bf16.msra.mxu0 0
    %146 = vmatprep.subr.bf16.mxu0 0
    %147 = vmatpush1.bf16.msra.mxu0 0
    %148 = vmatprep.subr.bf16.mxu0 0
    %149 = vmatpush1.bf16.msra.mxu0 0
    %150 = vmatprep.mubr.bf16.mxu0 0
    %151 = vmatmul.mubr.bf16.gmra.mrb[0].mxu0 %v116
    %v152 = vpop.f32.mrb[0].mxu0
    %v153 = vadd.f32 %v89, %v152
    %v154 = vpop.f32.mrb[0].mxu0
    %v155 = vpop.f32.mrb[0].mxu0
    %v156 = vpop.f32.mrb[0].mxu0
    %157 = vdwg.mxu0
    %v158 = vmul.f32 %v153, 0.2
    %v159 = vmax.f32 %v153, %v158
    %v160 = vpack.c.bf16 %v159, %v159
    %v161 = vld [vmem:[#allocation7] sm:$0xf]
    %v162 = vld [vmem:[#allocation7 + $0x4] sm:$0xf]
    %v163 = vld [vmem:[#allocation7 + $0x8] sm:$0xf]
    %v164 = vld [vmem:[#allocation7 + $0xc] sm:$0xf]
    %v165 = vld [vmem:[#allocation7 + $0x10] sm:$0xf]
    %v166 = vld [vmem:[#allocation7 + $0x14] sm:$0xf]
    %v167 = vld [vmem:[#allocation7 + $0x18] sm:$0xf]
    %v168 = vld [vmem:[#allocation7 + $0x1c] sm:$0xf]
    %v169 = vld [vmem:[#allocation7 + $0x20] sm:$0xf]
    %v170 = vld [vmem:[#allocation7 + $0x24] sm:$0xf]
    %v171 = vld [vmem:[#allocation7 + $0x28] sm:$0xf]
    %v172 = vld [vmem:[#allocation7 + $0x2c] sm:$0xf]
    %v173 = vld [vmem:[#allocation7 + $0x30] sm:$0xf]
    %v174 = vld [vmem:[#allocation7 + $0x34] sm:$0xf]
    %v175 = vld [vmem:[#allocation7 + $0x38] sm:$0xf]
    %v176 = vld [vmem:[#allocation7 + $0x3c] sm:$0xf]
    %v177 = vld [vmem:[%s4 + $0x1] sm:$0x1]
    %v178 = vlaneseq
    %v179 = vshrl.u32 %v178, 7
    %v180 = vsub.s32 0, %v179
    %v181 = vrot.slane %v177, %v180
    %v198 = vunpack.c.l.b16 %v161
    %v199 = vunpack.c.l.b16 %v162
    %v200 = vunpack.c.l.b16 %v163
    %v201 = vunpack.c.l.b16 %v164
    %v202 = vunpack.c.l.b16 %v165
    %v203 = vunpack.c.l.b16 %v166
    %v204 = vunpack.c.l.b16 %v167
    %v205 = vunpack.c.l.b16 %v168
    %v206 = vunpack.c.l.b16 %v169
    %v207 = vunpack.c.l.b16 %v170
    %v208 = vunpack.c.l.b16 %v171
    %v209 = vunpack.c.l.b16 %v172
    %v210 = vunpack.c.l.b16 %v173
    %v211 = vunpack.c.l.b16 %v174
    %v212 = vunpack.c.l.b16 %v175
    %v213 = vunpack.c.l.b16 %v176
    %v214 = vpack.c.b16 %v199, %v198
    %v215 = vpack.c.b16 %v201, %v200
    %v216 = vpack.c.b16 %v203, %v202
    %v217 = vpack.c.b16 %v205, %v204
    %v218 = vpack.c.b16 %v207, %v206
    %v219 = vpack.c.b16 %v209, %v208
    %v220 = vpack.c.b16 %v211, %v210
    %v221 = vpack.c.b16 %v213, %v212
    %230 = vmatprep.subr.bf16.mxu0 0
    %231 = vmatpush1.bf16.msra.mxu0 %v214
    %232 = vmatprep.subr.bf16.mxu0 0
    %233 = vmatpush1.bf16.msra.mxu0 %v215
    %234 = vmatprep.subr.bf16.mxu0 0
    %235 = vmatpush1.bf16.msra.mxu0 %v216
    %236 = vmatprep.subr.bf16.mxu0 0
    %237 = vmatpush1.bf16.msra.mxu0 %v217
    %238 = vmatprep.subr.bf16.mxu0 0
    %239 = vmatpush1.bf16.msra.mxu0 %v218
    %240 = vmatprep.subr.bf16.mxu0 0
    %241 = vmatpush1.bf16.msra.mxu0 %v219
    %242 = vmatprep.subr.bf16.mxu0 0
    %243 = vmatpush1.bf16.msra.mxu0 %v220
    %244 = vmatprep.subr.bf16.mxu0 0
    %245 = vmatpush1.bf16.msra.mxu0 %v221
    %246 = vmatprep.subr.bf16.mxu0 0
    %247 = vmatpush1.bf16.msra.mxu0 0
    %248 = vmatprep.subr.bf16.mxu0 0
    %249 = vmatpush1.bf16.msra.mxu0 0
    %250 = vmatprep.subr.bf16.mxu0 0
    %251 = vmatpush1.bf16.msra.mxu0 0
    %252 = vmatprep.subr.bf16.mxu0 0
    %253 = vmatpush1.bf16.msra.mxu0 0
    %254 = vmatprep.subr.bf16.mxu0 0
    %255 = vmatpush1.bf16.msra.mxu0 0
    %256 = vmatprep.subr.bf16.mxu0 0
    %257 = vmatpush1.bf16.msra.mxu0 0
    %258 = vmatprep.subr.bf16.mxu0 0
    %259 = vmatpush1.bf16.msra.mxu0 0
    %260 = vmatprep.subr.bf16.mxu0 0
    %261 = vmatpush1.bf16.msra.mxu0 0
    %262 = vmatprep.mubr.bf16.mxu0 0
    %263 = vmatmul.mubr.bf16.gmra.mrb[0].mxu0 %v160
    %v264 = vpop.f32.mrb[0].mxu0
    %v265 = vadd.f32 %v181, %v264
    %v266 = vpop.f32.mrb[0].mxu0
    %v267 = vpop.f32.mrb[0].mxu0
    %v268 = vpop.f32.mrb[0].mxu0
    %269 = vdwg.mxu0
    %v270 = vmul.f32 %v265, 0.2
    %v271 = vmax.f32 %v265, %v270
    %v272 = vpack.c.bf16 %v271, %v271
    %v273 = vld [vmem:[#allocation8] sm:$0xf]
    %v274 = vld [vmem:[#allocation8 + $0x4] sm:$0xf]
    %v275 = vld [vmem:[#allocation8 + $0x8] sm:$0xf]
    %v276 = vld [vmem:[#allocation8 + $0xc] sm:$0xf]
    %v277 = vld [vmem:[#allocation8 + $0x10] sm:$0xf]
    %v278 = vld [vmem:[#allocation8 + $0x14] sm:$0xf]
    %v279 = vld [vmem:[#allocation8 + $0x18] sm:$0xf]
    %v280 = vld [vmem:[#allocation8 + $0x1c] sm:$0xf]
    %v281 = vld [vmem:[#allocation8 + $0x20] sm:$0xf]
    %v282 = vld [vmem:[#allocation8 + $0x24] sm:$0xf]
    %v283 = vld [vmem:[#allocation8 + $0x28] sm:$0xf]
    %v284 = vld [vmem:[#allocation8 + $0x2c] sm:$0xf]
    %v285 = vld [vmem:[#allocation8 + $0x30] sm:$0xf]
    %v286 = vld [vmem:[#allocation8 + $0x34] sm:$0xf]
    %v287 = vld [vmem:[#allocation8 + $0x38] sm:$0xf]
    %v288 = vld [vmem:[#allocation8 + $0x3c] sm:$0xf]
    %v289 = vld [vmem:[%s4 + $0x2] sm:$0x1]
    %v290 = vlaneseq
    %v291 = vshrl.u32 %v290, 7
    %v292 = vsub.s32 0, %v291
    %v293 = vrot.slane %v289, %v292
    %v310 = vunpack.c.l.b16 %v273
    %v311 = vunpack.c.l.b16 %v274
    %v312 = vunpack.c.l.b16 %v275
    %v313 = vunpack.c.l.b16 %v276
    %v314 = vunpack.c.l.b16 %v277
    %v315 = vunpack.c.l.b16 %v278
    %v316 = vunpack.c.l.b16 %v279
    %v317 = vunpack.c.l.b16 %v280
    %v318 = vunpack.c.l.b16 %v281
    %v319 = vunpack.c.l.b16 %v282
    %v320 = vunpack.c.l.b16 %v283
    %v321 = vunpack.c.l.b16 %v284
    %v322 = vunpack.c.l.b16 %v285
    %v323 = vunpack.c.l.b16 %v286
    %v324 = vunpack.c.l.b16 %v287
    %v325 = vunpack.c.l.b16 %v288
    %v326 = vpack.c.b16 %v311, %v310
    %v327 = vpack.c.b16 %v313, %v312
    %v328 = vpack.c.b16 %v315, %v314
    %v329 = vpack.c.b16 %v317, %v316
    %v330 = vpack.c.b16 %v319, %v318
    %v331 = vpack.c.b16 %v321, %v320
    %v332 = vpack.c.b16 %v323, %v322
    %v333 = vpack.c.b16 %v325, %v324
    %342 = vmatprep.subr.bf16.mxu0 0
    %343 = vmatpush1.bf16.msra.mxu0 %v326
    %344 = vmatprep.subr.bf16.mxu0 0
    %345 = vmatpush1.bf16.msra.mxu0 %v327
    %346 = vmatprep.subr.bf16.mxu0 0
    %347 = vmatpush1.bf16.msra.mxu0 %v328
    %348 = vmatprep.subr.bf16.mxu0 0
    %349 = vmatpush1.bf16.msra.mxu0 %v329
    %350 = vmatprep.subr.bf16.mxu0 0
    %351 = vmatpush1.bf16.msra.mxu0 %v330
    %352 = vmatprep.subr.bf16.mxu0 0
    %353 = vmatpush1.bf16.msra.mxu0 %v331
    %354 = vmatprep.subr.bf16.mxu0 0
    %355 = vmatpush1.bf16.msra.mxu0 %v332
    %356 = vmatprep.subr.bf16.mxu0 0
    %357 = vmatpush1.bf16.msra.mxu0 %v333
    %358 = vmatprep.subr.bf16.mxu0 0
    %359 = vmatpush1.bf16.msra.mxu0 0
    %360 = vmatprep.subr.bf16.mxu0 0
    %361 = vmatpush1.bf16.msra.mxu0 0
    %362 = vmatprep.subr.bf16.mxu0 0
    %363 = vmatpush1.bf16.msra.mxu0 0
    %364 = vmatprep.subr.bf16.mxu0 0
    %365 = vmatpush1.bf16.msra.mxu0 0
    %366 = vmatprep.subr.bf16.mxu0 0
    %367 = vmatpush1.bf16.msra.mxu0 0
    %368 = vmatprep.subr.bf16.mxu0 0
    %369 = vmatpush1.bf16.msra.mxu0 0
    %370 = vmatprep.subr.bf16.mxu0 0
    %371 = vmatpush1.bf16.msra.mxu0 0
    %372 = vmatprep.subr.bf16.mxu0 0
    %373 = vmatpush1.bf16.msra.mxu0 0
    %374 = vmatprep.mubr.bf16.mxu0 0
    %375 = vmatmul.mubr.bf16.gmra.mrb[0].mxu0 %v272
    %v376 = vpop.f32.mrb[0].mxu0
    %v377 = vadd.f32 %v293, %v376
    %v378 = vpop.f32.mrb[0].mxu0
    %v379 = vpop.f32.mrb[0].mxu0
    %v380 = vpop.f32.mrb[0].mxu0
    %381 = vdwg.mxu0
    %382 = vst [vmem:[#allocation10] sm:$0xff] %v377
    // Predicated region
    $region38: #{tpu_custom_call.1} parent=1 // pred_check
      _
    $region39: #{tpu_custom_call.1} parent=1 // pred_check_branch
      %384 = sbr.rel (0) target = $region41
    $region40: #{tpu_custom_call.1} parent=1 // pred_region
      %s386 = ssub.s32 128, 128
      %387 = vsyncadd [#allocation4], %s386
      %s389 = sshll.u32 [#allocation10], 4
      %s390 = int_to_ptr.vmem [resolvable:$true] %s389
      %392 = dma.vmem_to_hbm [thread:$0]  %s390, 128, %s5, [#allocation4]
    $region41: #{tpu_custom_call.1} parent=1 // pred_fallthru
      _
    // Predicated region
    $region42: #{tpu_custom_call.1} parent=1 // pred_check
      _
    $region43: #{tpu_custom_call.1} parent=1 // pred_check_branch
      %394 = sbr.rel (0) target = $region45
    $region44: #{tpu_custom_call.1} parent=1 // pred_region
      %395 = dma.done [#allocation4], 128
    $region45: #{tpu_custom_call.1} parent=1 // pred_fallthru
      _
    %396 = vsyncpa [#allocation3], 1
    %397 = vsyncpa [#allocation6], 1
    %398 = vsyncpa [#allocation9], 1
    %399 = vsyncpa [#allocation4], 1

</llo_original>
